<compile_context>
chip_gen: v6e
topology: v6e:2x2x1
jax: 0.10.0
libtpu: 0.0.40
codegen_flags: <defaults>
</compile_context>

<pallas_src>
import functools

import jax
import jax.numpy as jnp
import numpy as np
from jax import lax
from jax.experimental import pallas as pl
from jax.experimental.pallas import tpu as pltpu


def _round_up(x, m):
    return ((x + m - 1) // m) * m


def _pick_tile(n_pad, max_t, mult=128):
    """Largest multiple of `mult` that divides n_pad and is <= max_t."""
    best = mult
    cand = mult
    limit = min(max_t, n_pad)
    while cand <= limit:
        if n_pad % cand == 0:
            best = cand
        cand += mult
    return best


def lgae_decode_kernel(z_row_ref, z_col_ref, a_ref):
    # logits = Z_i @ Z_j^T, expressed as a dot_general contracting the last
    # axes of both tiles (no explicit transpose -> no XLU vxpose of z_j).
    logits = lax.dot_general(
        z_row_ref[...],                     # (tm, H) f32
        z_col_ref[...],                     # (tn, H) f32
        dimension_numbers=(((1,), (1,)), ((), ())),
        preferred_element_type=jnp.float32,
    )                                       # (tm, tn) f32
    a_ref[...] = jax.nn.sigmoid(logits)     # f32 sigmoid (EUP), f32 writeback


@functools.partial(jax.jit, static_argnames=("max_tm", "max_tn"))
def lgae_forward(x, w, *, max_tm=256, max_tn=2048):
    """x: [N, D] f32, w: [D, H] f32 -> A_pred: [N, N] f32 = sigmoid((XW)(XW)^T)."""
    n, d = x.shape
    d2, h = w.shape
    assert d == d2

    # ---- Encode (identity activation), once, outside the kernel. ----
    z = jnp.dot(x, w, preferred_element_type=jnp.float32)       # (N, H) f32

    # ---- Minimal padding: multiple of 128 (lane width), not of the tile. ----
    n_pad = _round_up(n, 128)
    if n_pad != n:
        # Zero rows -> zero logits -> sigmoid(0)=0.5 only in the pad region,
        # which is sliced off below.
        z = jnp.pad(z, ((0, n_pad - n), (0, 0)))

    # ---- Tiles: divisors of n_pad; lane-wide (tn) output tile. ----
    tm = _pick_tile(n_pad, max_tm)
    tn = _pick_tile(n_pad, max_tn)
    grid = (n_pad // tm, n_pad // tn)
    grid_i, _ = grid

    cost = pl.CostEstimate(
        flops=2 * n_pad * n_pad * h,                 # decode matmuls
        transcendentals=n_pad * n_pad,               # sigmoid
        bytes_accessed=(
            4 * n_pad * n_pad                        # A_pred writeback (dominant)
            + 4 * n_pad * h                          # row tiles (fetched once per i)
            + 4 * grid_i * n_pad * h                 # col tiles (re-fetched per tile-row)
        ),
    )

    a_pad = pl.pallas_call(
        lgae_decode_kernel,
        out_shape=jax.ShapeDtypeStruct((n_pad, n_pad), jnp.float32),
        grid_spec=pltpu.PrefetchScalarGridSpec(
            num_scalar_prefetch=0,
            grid=grid,
            in_specs=[
                pl.BlockSpec((tm, h), lambda i, j: (i, 0)),   # Z row tile
                pl.BlockSpec((tn, h), lambda i, j: (j, 0)),   # Z col tile
            ],
            out_specs=pl.BlockSpec((tm, tn), lambda i, j: (i, j)),
        ),
        compiler_params=pltpu.CompilerParams(
            dimension_semantics=("parallel", "parallel")),
        cost_estimate=cost,
    )(z, z)

    if n_pad != n:
        # Only emitted for ragged N; pad is at most 127 rows/cols.
        a_pad = a_pad[:n, :n]
    return a_pad


def glorot_init(key, input_dim, output_dim):
    # Matches glorot_init: uniform in [-r, r], r = sqrt(6 / (in + out)).
    r = np.sqrt(6.0 / (input_dim + output_dim))
    return jax.random.uniform(
        key, (input_dim, output_dim), dtype=jnp.float32, minval=-r, maxval=r
    )


def _numpy_reference(x, w):
    z = np.asarray(x, dtype=np.float64) @ np.asarray(w, dtype=np.float64)
    logits = z @ z.T
    return (1.0 / (1.0 + np.exp(-logits))).astype(np.float32)


if __name__ == "__main__":
    # Small shapes consistent with the module: N=128 nodes, input_dim=64,
    # hidden1_dim=32.
    N, INPUT_DIM, HIDDEN1_DIM = 128, 64, 32

    key = jax.random.PRNGKey(0)
    kx, kw, ka = jax.random.split(key, 3)

    X = jax.random.normal(kx, (N, INPUT_DIM), dtype=jnp.float32)
    W = glorot_init(kw, INPUT_DIM, HIDDEN1_DIM)

    # `adj` is held by the module but its product is discarded in forward();
    # built only to mirror the constructor. train_edges / train_false_edges
    # are unused by forward() (only by the decode(z, edges) helper).
    adj = (jax.random.uniform(ka, (N, N)) < 0.05).astype(jnp.float32)

    # Single-tile path (N multiple of 128, grid (1,1), no padding, no slice).
    A_pred = jax.block_until_ready(lgae_forward(X, W))
    np.testing.assert_allclose(
        np.asarray(A_pred), _numpy_reference(X, W), rtol=3e-2, atol=3e-2)

    # Padding + multi-tile + slice path: N=200 -> n_pad=256, grid (2,2).
    X2 = jax.random.normal(jax.random.PRNGKey(1), (200, INPUT_DIM), dtype=jnp.float32)
    A2 = jax.block_until_ready(lgae_forward(X2, W, max_tm=128, max_tn=128))
    assert A2.shape == (200, 200)
    np.testing.assert_allclose(
        np.asarray(A2), _numpy_reference(X2, W), rtol=3e-2, atol=3e-2)

    # Asymmetric lane-wide tiles, no padding: N=384 -> tm=128, tn=384, grid (3,1).
    X3 = jax.random.normal(jax.random.PRNGKey(2), (384, INPUT_DIM), dtype=jnp.float32)
    A3 = jax.block_until_ready(lgae_forward(X3, W, max_tm=128, max_tn=2048))
    np.testing.assert_allclose(
        np.asarray(A3), _numpy_reference(X3, W), rtol=3e-2, atol=3e-2)

    print("KERNEL_OK")
</pallas_src>

<mosaic_0001>
module attributes {stable_mosaic.version = 11 : i64} {
  func.func @lgae_decode_kernel(%arg0: i32, %arg1: i32, %arg2: memref<128x32xf32, #tpu.memory_space<vmem>>, %arg3: memref<128x32xf32, #tpu.memory_space<vmem>>, %arg4: memref<128x128xf32, #tpu.memory_space<vmem>>) attributes {dimension_semantics = [#tpu.dimension_semantics<parallel>, #tpu.dimension_semantics<parallel>], iteration_bounds = array<i64: 1, 1>, scalar_prefetch = 0 : i64, scratch_operands = 0 : i64, tpu.core_type = #tpu.core_type<tc>, window_params = [{transform_indices = @transform_0, window_bounds = array<i64: 128, 32>}, {transform_indices = @transform_1, window_bounds = array<i64: 128, 32>}, {transform_indices = @transform_2, window_bounds = array<i64: 128, 128>}]} {
    %c0 = arith.constant 0 : index
    %c0_0 = arith.constant 0 : index
    %0 = vector.load %arg2[%c0, %c0_0] : memref<128x32xf32, #tpu.memory_space<vmem>>, vector<128x32xf32>
    %c0_1 = arith.constant 0 : index
    %c0_2 = arith.constant 0 : index
    %1 = vector.load %arg3[%c0_1, %c0_2] : memref<128x32xf32, #tpu.memory_space<vmem>>, vector<128x32xf32>
    %cst = arith.constant dense<0.000000e+00> : vector<128x128xf32>
    %2 = tpu.matmul %0, %1, %cst {dimension_numbers = #tpu.dot_dimension_numbers<[1], [1], [0], [0], [0, 0, 1, 0], [], []>} : vector<128x32xf32>, vector<128x32xf32>, vector<128x128xf32> -> vector<128x128xf32>
    %3 = arith.negf %2 : vector<128x128xf32>
    %4 = math.exp %3 : vector<128x128xf32>
    %cst_3 = arith.constant 1.000000e+00 : f32
    %5 = vector.broadcast %cst_3 : f32 to vector<128x128xf32>
    %6 = arith.addf %5, %4 : vector<128x128xf32>
    %7 = arith.divf %5, %6 : vector<128x128xf32>
    %c0_4 = arith.constant 0 : index
    %c0_5 = arith.constant 0 : index
    %8 = vector.load %arg4[%c0_4, %c0_5] : memref<128x128xf32, #tpu.memory_space<vmem>>, vector<128x128xf32>
    tpu.vector_store %arg4[%c0_4, %c0_5], %7 {strides = array<i32>} : memref<128x128xf32, #tpu.memory_space<vmem>>, vector<128x128xf32>,
    return
  }
  func.func @transform_0(%arg0: i32, %arg1: i32) -> (i32, i32) {
    %c0_i32 = arith.constant 0 : i32
    %c0_i32_0 = arith.constant 0 : i32
    return %arg0, %c0_i32 : i32, i32
  }
  func.func @transform_1(%arg0: i32, %arg1: i32) -> (i32, i32) {
    %c0_i32 = arith.constant 0 : i32
    %c0_i32_0 = arith.constant 0 : i32
    return %arg1, %c0_i32 : i32, i32
  }
  func.func @transform_2(%arg0: i32, %arg1: i32) -> (i32, i32) {
    %c0_i32 = arith.constant 0 : i32
    return %arg0, %arg1 : i32, i32
  }
}

</mosaic_0001>

<llo_original>
// kernel: lgae_forward.1
$region0: #{lgae_forward.1}
  #allocation0 [shape = 'u32[]', space=smem, size = 0x4, offset = 0x4, fixed_abs, tag = 'smem constant byte address 0x4 - core index']
  #allocation1 [shape = 'u32[144,128]{1,0:T(1,128)}', space=vmem, size = 0x12000, scoped, tag = 'internal scratch']
  %s0 = inlined_call_operand.vmem [shape: f32[128,32], index: 0, kind: input, shape index: {}, may-alias: {0,1}]
  %s1 = inlined_call_operand.vmem [shape: f32[128,32], index: 1, kind: input, shape index: {}, may-alias: {0,1}]
  %s2 = inlined_call_operand.hbm [shape: f32[128,128], index: 2, kind: output, shape index: {}]
  %s3 = sld [smem:[#allocation0]]
  $region18: #{lgae_forward.1} parent=0
    _
  %s5 = ssub.s32 1, %s3
  %s6 = scalar_select 0, %s5, %s3
  $region1: #{lgae_forward.1} parent=0
    #allocation2 [shape = 'u8[65536]{0}', space=vmem, size = 0x10000, scoped, tag = 'output window, operand 0, single buffered']
    #allocation3 [shape = 's32[1]{0}', space=sflag, size = 0x4, scoped, tag = 'scoped memory for lgae_forward.1']
    %7 = vsyncpa [#allocation3], 0
    // Predicated region
    $region2: #{lgae_forward.1} parent=1 // pred_check
      _
    $region3: #{lgae_forward.1} parent=1 // pred_check_branch
      %9 = sbr.rel (0) target = $region5
    $region4: #{lgae_forward.1} parent=1 // pred_region
      _
    $region5: #{lgae_forward.1} parent=1 // pred_fallthru
      _
    // Predicated region
    $region6: #{lgae_forward.1} parent=1 // pred_check
      _
    $region7: #{lgae_forward.1} parent=1 // pred_check_branch
      %11 = sbr.rel (0) target = $region9
    $region8: #{lgae_forward.1} parent=1 // pred_region
      _
    $region9: #{lgae_forward.1} parent=1 // pred_fallthru
      _
    %v12 = vld [vmem:[%s0] sm:$0xff]
    %v13 = vld [vmem:[%s0 + $0x8] sm:$0xff]
    %v14 = vld [vmem:[%s0 + $0x10] sm:$0xff]
    %v15 = vld [vmem:[%s0 + $0x18] sm:$0xff]
    %v16 = vld [vmem:[%s0 + $0x20] sm:$0xff]
    %v17 = vld [vmem:[%s0 + $0x28] sm:$0xff]
    %v18 = vld [vmem:[%s0 + $0x30] sm:$0xff]
    %v19 = vld [vmem:[%s0 + $0x38] sm:$0xff]
    %v20 = vld [vmem:[%s0 + $0x40] sm:$0xff]
    %v21 = vld [vmem:[%s0 + $0x48] sm:$0xff]
    %v22 = vld [vmem:[%s0 + $0x50] sm:$0xff]
    %v23 = vld [vmem:[%s0 + $0x58] sm:$0xff]
    %v24 = vld [vmem:[%s0 + $0x60] sm:$0xff]
    %v25 = vld [vmem:[%s0 + $0x68] sm:$0xff]
    %v26 = vld [vmem:[%s0 + $0x70] sm:$0xff]
    %v27 = vld [vmem:[%s0 + $0x78] sm:$0xff]
    %v28 = vld [vmem:[%s1] sm:$0xff]
    %v29 = vld [vmem:[%s1 + $0x8] sm:$0xff]
    %v30 = vld [vmem:[%s1 + $0x10] sm:$0xff]
    %v31 = vld [vmem:[%s1 + $0x18] sm:$0xff]
    %v32 = vld [vmem:[%s1 + $0x20] sm:$0xff]
    %v33 = vld [vmem:[%s1 + $0x28] sm:$0xff]
    %v34 = vld [vmem:[%s1 + $0x30] sm:$0xff]
    %v35 = vld [vmem:[%s1 + $0x38] sm:$0xff]
    %v36 = vld [vmem:[%s1 + $0x40] sm:$0xff]
    %v37 = vld [vmem:[%s1 + $0x48] sm:$0xff]
    %v38 = vld [vmem:[%s1 + $0x50] sm:$0xff]
    %v39 = vld [vmem:[%s1 + $0x58] sm:$0xff]
    %v40 = vld [vmem:[%s1 + $0x60] sm:$0xff]
    %v41 = vld [vmem:[%s1 + $0x68] sm:$0xff]
    %v42 = vld [vmem:[%s1 + $0x70] sm:$0xff]
    %v43 = vld [vmem:[%s1 + $0x78] sm:$0xff]
    %vm44 = vcmask 261120
    %v46 = vsel %vm44, %v12, 0
    %v49 = vsel %vm44, %v13, 0
    %v52 = vsel %vm44, %v14, 0
    %v55 = vsel %vm44, %v15, 0
    %v58 = vsel %vm44, %v16, 0
    %v61 = vsel %vm44, %v17, 0
    %v64 = vsel %vm44, %v18, 0
    %v67 = vsel %vm44, %v19, 0
    %v70 = vsel %vm44, %v20, 0
    %v73 = vsel %vm44, %v21, 0
    %v76 = vsel %vm44, %v22, 0
    %v79 = vsel %vm44, %v23, 0
    %v82 = vsel %vm44, %v24, 0
    %v85 = vsel %vm44, %v25, 0
    %v88 = vsel %vm44, %v26, 0
    %v91 = vsel %vm44, %v27, 0
    %v94 = vsel %vm44, %v28, 0
    %v97 = vsel %vm44, %v29, 0
    %v100 = vsel %vm44, %v30, 0
    %v103 = vsel %vm44, %v31, 0
    %v106 = vsel %vm44, %v32, 0
    %v109 = vsel %vm44, %v33, 0
    %v112 = vsel %vm44, %v34, 0
    %v115 = vsel %vm44, %v35, 0
    %v118 = vsel %vm44, %v36, 0
    %v121 = vsel %vm44, %v37, 0
    %v124 = vsel %vm44, %v38, 0
    %v127 = vsel %vm44, %v39, 0
    %v130 = vsel %vm44, %v40, 0
    %v133 = vsel %vm44, %v41, 0
    %v136 = vsel %vm44, %v42, 0
    %v139 = vsel %vm44, %v43, 0
    %141 = vmatprep.subr.mxu0 0.0
    %142 = vmatpush1.xpose.msra.mxu0 %v139
    %143 = vmatprep.subr.mxu0 0.0
    %144 = vmatpush1.xpose.msra.mxu0 %v136
    %145 = vmatprep.subr.mxu0 0.0
    %146 = vmatpush1.xpose.msra.mxu0 %v133
    %147 = vmatprep.subr.mxu0 0.0
    %148 = vmatpush1.xpose.msra.mxu0 %v130
    %149 = vmatprep.subr.mxu0 0.0
    %150 = vmatpush1.xpose.msra.mxu0 %v127
    %151 = vmatprep.subr.mxu0 0.0
    %152 = vmatpush1.xpose.msra.mxu0 %v124
    %153 = vmatprep.subr.mxu0 0.0
    %154 = vmatpush1.xpose.msra.mxu0 %v121
    %155 = vmatprep.subr.mxu0 0.0
    %156 = vmatpush1.xpose.msra.mxu0 %v118
    %157 = vmatprep.subr.mxu0 0.0
    %158 = vmatpush1.xpose.msra.mxu0 %v115
    %159 = vmatprep.subr.mxu0 0.0
    %160 = vmatpush1.xpose.msra.mxu0 %v112
    %161 = vmatprep.subr.mxu0 0.0
    %162 = vmatpush1.xpose.msra.mxu0 %v109
    %163 = vmatprep.subr.mxu0 0.0
    %164 = vmatpush1.xpose.msra.mxu0 %v106
    %165 = vmatprep.subr.mxu0 0.0
    %166 = vmatpush1.xpose.msra.mxu0 %v103
    %167 = vmatprep.subr.mxu0 0.0
    %168 = vmatpush1.xpose.msra.mxu0 %v100
    %169 = vmatprep.subr.mxu0 0.0
    %170 = vmatpush1.xpose.msra.mxu0 %v97
    %171 = vmatprep.subr.mxu0 0.0
    %172 = vmatpush1.xpose.msra.mxu0 %v94
    %173 = vmatprep.subr.mxu0 0.0
    %174 = vmatpush2.xpose.msra.mxu0 0.0
    %175 = vmatprep.subr.mxu0 0.0
    %176 = vmatpush2.xpose.msra.mxu0 0.0
    %177 = vmatprep.subr.mxu0 0.0
    %178 = vmatpush2.xpose.msra.mxu0 0.0
    %179 = vmatprep.subr.mxu0 0.0
    %180 = vmatpush2.xpose.msra.mxu0 0.0
    %181 = vmatprep.subr.mxu0 0.0
    %182 = vmatpush2.xpose.msra.mxu0 0.0
    %183 = vmatprep.subr.mxu0 0.0
    %184 = vmatpush2.xpose.msra.mxu0 0.0
    %185 = vmatprep.subr.mxu0 0.0
    %186 = vmatpush2.xpose.msra.mxu0 0.0
    %187 = vmatprep.subr.mxu0 0.0
    %188 = vmatpush2.xpose.msra.mxu0 0.0
    %189 = vmatprep.subr.mxu0 0.0
    %190 = vmatpush2.xpose.msra.mxu0 0.0
    %191 = vmatprep.subr.mxu0 0.0
    %192 = vmatpush2.xpose.msra.mxu0 0.0
    %193 = vmatprep.subr.mxu0 0.0
    %194 = vmatpush2.xpose.msra.mxu0 0.0
    %195 = vmatprep.subr.mxu0 0.0
    %196 = vmatpush2.xpose.msra.mxu0 0.0
    %197 = vmatprep.subr.mxu0 0.0
    %198 = vmatpush2.xpose.msra.mxu0 0.0
    %199 = vmatprep.subr.mxu0 0.0
    %200 = vmatpush2.xpose.msra.mxu0 0.0
    %201 = vmatprep.subr.mxu0 0.0
    %202 = vmatpush2.xpose.msra.mxu0 0.0
    %203 = vmatprep.subr.mxu0 0.0
    %204 = vmatpush2.xpose.msra.mxu0 0.0
    %205 = vmatprep.mubr.f32.mxu0 0.0
    %206 = vmatmul.mubr.f32.gmra.mxu0 %v46
    %v207 = vpop.f32.mrf.mxu0
    %v208 = vadd.f32 0.0, %v207
    %v209 = vpop.f32.mrf.mxu0
    %210 = vmatprep.mubr.f32.mxu0 0.0
    %211 = vmatmul.mubr.f32.gmra.mxu0 %v49
    %v212 = vpop.f32.mrf.mxu0
    %v213 = vadd.f32 0.0, %v212
    %v214 = vpop.f32.mrf.mxu0
    %215 = vmatprep.mubr.f32.mxu0 0.0
    %216 = vmatmul.mubr.f32.gmra.mxu0 %v52
    %v217 = vpop.f32.mrf.mxu0
    %v218 = vadd.f32 0.0, %v217
    %v219 = vpop.f32.mrf.mxu0
    %220 = vmatprep.mubr.f32.mxu0 0.0
    %221 = vmatmul.mubr.f32.gmra.mxu0 %v55
    %v222 = vpop.f32.mrf.mxu0
    %v223 = vadd.f32 0.0, %v222
    %v224 = vpop.f32.mrf.mxu0
    %225 = vmatprep.mubr.f32.mxu0 0.0
    %226 = vmatmul.mubr.f32.gmra.mxu0 %v58
    %v227 = vpop.f32.mrf.mxu0
    %v228 = vadd.f32 0.0, %v227
    %v229 = vpop.f32.mrf.mxu0
    %230 = vmatprep.mubr.f32.mxu0 0.0
    %231 = vmatmul.mubr.f32.gmra.mxu0 %v61
    %v232 = vpop.f32.mrf.mxu0
    %v233 = vadd.f32 0.0, %v232
    %v234 = vpop.f32.mrf.mxu0
    %235 = vmatprep.mubr.f32.mxu0 0.0
    %236 = vmatmul.mubr.f32.gmra.mxu0 %v64
    %v237 = vpop.f32.mrf.mxu0
    %v238 = vadd.f32 0.0, %v237
    %v239 = vpop.f32.mrf.mxu0
    %240 = vmatprep.mubr.f32.mxu0 0.0
    %241 = vmatmul.mubr.f32.gmra.mxu0 %v67
    %v242 = vpop.f32.mrf.mxu0
    %v243 = vadd.f32 0.0, %v242
    %v244 = vpop.f32.mrf.mxu0
    %245 = vmatprep.mubr.f32.mxu0 0.0
    %246 = vmatmul.mubr.f32.gmra.mxu0 %v70
    %v247 = vpop.f32.mrf.mxu0
    %v248 = vadd.f32 0.0, %v247
    %v249 = vpop.f32.mrf.mxu0
    %250 = vmatprep.mubr.f32.mxu0 0.0
    %251 = vmatmul.mubr.f32.gmra.mxu0 %v73
    %v252 = vpop.f32.mrf.mxu0
    %v253 = vadd.f32 0.0, %v252
    %v254 = vpop.f32.mrf.mxu0
    %255 = vmatprep.mubr.f32.mxu0 0.0
    %256 = vmatmul.mubr.f32.gmra.mxu0 %v76
    %v257 = vpop.f32.mrf.mxu0
    %v258 = vadd.f32 0.0, %v257
    %v259 = vpop.f32.mrf.mxu0
    %260 = vmatprep.mubr.f32.mxu0 0.0
    %261 = vmatmul.mubr.f32.gmra.mxu0 %v79
    %v262 = vpop.f32.mrf.mxu0
    %v263 = vadd.f32 0.0, %v262
    %v264 = vpop.f32.mrf.mxu0
    %265 = vmatprep.mubr.f32.mxu0 0.0
    %266 = vmatmul.mubr.f32.gmra.mxu0 %v82
    %v267 = vpop.f32.mrf.mxu0
    %v268 = vadd.f32 0.0, %v267
    %v269 = vpop.f32.mrf.mxu0
    %270 = vmatprep.mubr.f32.mxu0 0.0
    %271 = vmatmul.mubr.f32.gmra.mxu0 %v85
    %v272 = vpop.f32.mrf.mxu0
    %v273 = vadd.f32 0.0, %v272
    %v274 = vpop.f32.mrf.mxu0
    %275 = vmatprep.mubr.f32.mxu0 0.0
    %276 = vmatmul.mubr.f32.gmra.mxu0 %v88
    %v277 = vpop.f32.mrf.mxu0
    %v278 = vadd.f32 0.0, %v277
    %v279 = vpop.f32.mrf.mxu0
    %280 = vmatprep.mubr.f32.mxu0 0.0
    %281 = vmatmul.mubr.f32.gmra.mxu0 %v91
    %v282 = vpop.f32.mrf.mxu0
    %v283 = vadd.f32 0.0, %v282
    %v284 = vpop.f32.mrf.mxu0
    %285 = vdwg.mxu0
    %v286 = vxor.u32 %v208, 2147483648
    %v287 = vxor.u32 %v213, 2147483648
    %v288 = vxor.u32 %v218, 2147483648
    %v289 = vxor.u32 %v223, 2147483648
    %v290 = vxor.u32 %v228, 2147483648
    %v291 = vxor.u32 %v233, 2147483648
    %v292 = vxor.u32 %v238, 2147483648
    %v293 = vxor.u32 %v243, 2147483648
    %v294 = vxor.u32 %v248, 2147483648
    %v295 = vxor.u32 %v253, 2147483648
    %v296 = vxor.u32 %v258, 2147483648
    %v297 = vxor.u32 %v263, 2147483648
    %v298 = vxor.u32 %v268, 2147483648
    %v299 = vxor.u32 %v273, 2147483648
    %v300 = vxor.u32 %v278, 2147483648
    %v301 = vxor.u32 %v283, 2147483648
    %v302 = vmul.f32 %v286, 1.442695
    %v303 = vpow.pop %v302
    %v304 = vmul.f32 %v287, 1.442695
    %v305 = vpow.pop %v304
    %v306 = vmul.f32 %v288, 1.442695
    %v307 = vpow.pop %v306
    %v308 = vmul.f32 %v289, 1.442695
    %v309 = vpow.pop %v308
    %v310 = vmul.f32 %v290, 1.442695
    %v311 = vpow.pop %v310
    %v312 = vmul.f32 %v291, 1.442695
    %v313 = vpow.pop %v312
    %v314 = vmul.f32 %v292, 1.442695
    %v315 = vpow.pop %v314
    %v316 = vmul.f32 %v293, 1.442695
    %v317 = vpow.pop %v316
    %v318 = vmul.f32 %v294, 1.442695
    %v319 = vpow.pop %v318
    %v320 = vmul.f32 %v295, 1.442695
    %v321 = vpow.pop %v320
    %v322 = vmul.f32 %v296, 1.442695
    %v323 = vpow.pop %v322
    %v324 = vmul.f32 %v297, 1.442695
    %v325 = vpow.pop %v324
    %v326 = vmul.f32 %v298, 1.442695
    %v327 = vpow.pop %v326
    %v328 = vmul.f32 %v299, 1.442695
    %v329 = vpow.pop %v328
    %v330 = vmul.f32 %v300, 1.442695
    %v331 = vpow.pop %v330
    %v332 = vmul.f32 %v301, 1.442695
    %v333 = vpow.pop %v332
    %v334 = vadd.f32 %v303, 1.0
    %v335 = vadd.f32 %v305, 1.0
    %v336 = vadd.f32 %v307, 1.0
    %v337 = vadd.f32 %v309, 1.0
    %v338 = vadd.f32 %v311, 1.0
    %v339 = vadd.f32 %v313, 1.0
    %v340 = vadd.f32 %v315, 1.0
    %v341 = vadd.f32 %v317, 1.0
    %v342 = vadd.f32 %v319, 1.0
    %v343 = vadd.f32 %v321, 1.0
    %v344 = vadd.f32 %v323, 1.0
    %v345 = vadd.f32 %v325, 1.0
    %v346 = vadd.f32 %v327, 1.0
    %v347 = vadd.f32 %v329, 1.0
    %v348 = vadd.f32 %v331, 1.0
    %v349 = vadd.f32 %v333, 1.0
    %v350 = vrcp.pop %v334
    %v351 = vmul.f32 1.0, %v350
    %v352 = vrcp.pop %v335
    %v353 = vmul.f32 1.0, %v352
    %v354 = vrcp.pop %v336
    %v355 = vmul.f32 1.0, %v354
    %v356 = vrcp.pop %v337
    %v357 = vmul.f32 1.0, %v356
    %v358 = vrcp.pop %v338
    %v359 = vmul.f32 1.0, %v358
    %v360 = vrcp.pop %v339
    %v361 = vmul.f32 1.0, %v360
    %v362 = vrcp.pop %v340
    %v363 = vmul.f32 1.0, %v362
    %v364 = vrcp.pop %v341
    %v365 = vmul.f32 1.0, %v364
    %v366 = vrcp.pop %v342
    %v367 = vmul.f32 1.0, %v366
    %v368 = vrcp.pop %v343
    %v369 = vmul.f32 1.0, %v368
    %v370 = vrcp.pop %v344
    %v371 = vmul.f32 1.0, %v370
    %v372 = vrcp.pop %v345
    %v373 = vmul.f32 1.0, %v372
    %v374 = vrcp.pop %v346
    %v375 = vmul.f32 1.0, %v374
    %v376 = vrcp.pop %v347
    %v377 = vmul.f32 1.0, %v376
    %v378 = vrcp.pop %v348
    %v379 = vmul.f32 1.0, %v378
    %v380 = vrcp.pop %v349
    %v381 = vmul.f32 1.0, %v380
    %382 = vst [vmem:[#allocation2] sm:$0xff] %v351
    %383 = vst [vmem:[#allocation2 + $0x8] sm:$0xff] %v353
    %384 = vst [vmem:[#allocation2 + $0x10] sm:$0xff] %v355
    %385 = vst [vmem:[#allocation2 + $0x18] sm:$0xff] %v357
    %386 = vst [vmem:[#allocation2 + $0x20] sm:$0xff] %v359
    %387 = vst [vmem:[#allocation2 + $0x28] sm:$0xff] %v361
    %388 = vst [vmem:[#allocation2 + $0x30] sm:$0xff] %v363
    %389 = vst [vmem:[#allocation2 + $0x38] sm:$0xff] %v365
    %390 = vst [vmem:[#allocation2 + $0x40] sm:$0xff] %v367
    %391 = vst [vmem:[#allocation2 + $0x48] sm:$0xff] %v369
    %392 = vst [vmem:[#allocation2 + $0x50] sm:$0xff] %v371
    %393 = vst [vmem:[#allocation2 + $0x58] sm:$0xff] %v373
    %394 = vst [vmem:[#allocation2 + $0x60] sm:$0xff] %v375
    %395 = vst [vmem:[#allocation2 + $0x68] sm:$0xff] %v377
    %396 = vst [vmem:[#allocation2 + $0x70] sm:$0xff] %v379
    %397 = vst [vmem:[#allocation2 + $0x78] sm:$0xff] %v381
    // Predicated region
    $region10: #{lgae_forward.1} parent=1 // pred_check
      _
    $region11: #{lgae_forward.1} parent=1 // pred_check_branch
      %399 = sbr.rel (0) target = $region13
    $region12: #{lgae_forward.1} parent=1 // pred_region
      %s401 = ssub.s32 2048, 2048
      %402 = vsyncadd [#allocation3], %s401
      %s403 = sshll.u32 [#allocation2], 4
      %s404 = int_to_ptr.vmem [resolvable:$true] %s403
      %409 = dma.vmem_to_hbm [thread:$0]  %s404, 2048, %s2, [#allocation3], 128, 128, 8
    $region13: #{lgae_forward.1} parent=1 // pred_fallthru
      _
    // Predicated region
    $region14: #{lgae_forward.1} parent=1 // pred_check
      _
    $region15: #{lgae_forward.1} parent=1 // pred_check_branch
      %411 = sbr.rel (0) target = $region17
    $region16: #{lgae_forward.1} parent=1 // pred_region
      %412 = dma.done [#allocation3], 2048
    $region17: #{lgae_forward.1} parent=1 // pred_fallthru
      _
    %413 = vsyncpa [#allocation3], 1

</llo_original>
